<compile_context>
chip_gen: v7x
topology: tpu7x:2x2x1
jax: 0.10.0
libtpu: 0.0.40
codegen_flags: <defaults>
</compile_context>

<pallas_src>
import math
import functools

import jax
import jax.numpy as jnp
from jax import lax
from jax.experimental import pallas as pl
from jax.experimental.pallas import tpu as pltpu


# ---------------------------------------------------------------------------
# Tiled linear:  y = x @ W + b     (fused QKV / KV / output projections)
# ---------------------------------------------------------------------------

def _pick_tile(dim, target):
    # Use the target tile when it divides the dim; otherwise fall back to the
    # full dim (a full-extent block is always legal under the (8,128) rule).
    return target if dim % target == 0 else dim


def _linear_kernel(x_ref, w_ref, b_ref, o_ref, acc_ref):
    k = pl.program_id(2)

    @pl.when(k == 0)
    def _():
        acc_ref[...] = jnp.zeros_like(acc_ref)

    acc_ref[...] += jnp.dot(x_ref[...], w_ref[...],
                            preferred_element_type=jnp.float32)

    @pl.when(k == pl.num_programs(2) - 1)
    def _():
        o_ref[...] = (acc_ref[...] + b_ref[...].astype(jnp.float32)
                      ).astype(o_ref.dtype)


def linear(x2d, w, b, *, tm=256, tn=256, tk=512):
    """x2d: [M, K], w: [K, N], b: [N] -> [M, N] in x2d.dtype (f32 accumulate).

    Tiles (<=256x512 f32, double buffered ~3.5 MiB) fit the scoped-VMEM
    default on v5e/v6e/v7x; the explicit 32 MiB cap leaves headroom on v7x's
    64 MiB physical VMEM.
    """
    M, K = x2d.shape
    N = w.shape[1]
    tm = _pick_tile(M, tm)
    tn = _pick_tile(N, tn)
    tk = _pick_tile(K, tk)
    grid = (M // tm, N // tn, K // tk)
    return pl.pallas_call(
        _linear_kernel,
        grid_spec=pltpu.PrefetchScalarGridSpec(
            num_scalar_prefetch=0,
            grid=grid,
            in_specs=[
                pl.BlockSpec((tm, tk), lambda i, j, k: (i, k)),
                pl.BlockSpec((tk, tn), lambda i, j, k: (k, j)),
                pl.BlockSpec((1, tn), lambda i, j, k: (0, j)),
            ],
            out_specs=pl.BlockSpec((tm, tn), lambda i, j, k: (i, j)),
            scratch_shapes=[pltpu.VMEM((tm, tn), jnp.float32)],
        ),
        out_shape=jax.ShapeDtypeStruct((M, N), x2d.dtype),
        compiler_params=pltpu.CompilerParams(
            dimension_semantics=("parallel", "parallel", "arbitrary"),
            vmem_limit_bytes=32 * 1024 * 1024,
        ),
    )(x2d, w.astype(x2d.dtype), b.astype(jnp.float32).reshape(1, N))


# ---------------------------------------------------------------------------
# Mean (over heads & channels) of the circular cross-correlation
#   mean_value[b, tau] = (1/C) * sum_c sum_t q[b,t,c] * k[b,(t-tau)%L,c]
# computed per batch as one MXU matmul A = q @ k^T plus a circulant-diagonal
# reduction:  mean_value[tau] = (1/C) * sum_s A[(tau+s)%L, s].
# ---------------------------------------------------------------------------

def _corr_mean_kernel(q_ref, k_ref, mv_ref, a2_ref):
    L = q_ref.shape[1]
    # A[t, s] = sum_c q[t, c] * k[s, c]  (MXU, f32 accumulation)
    a = lax.dot_general(
        q_ref[0], k_ref[0],
        dimension_numbers=(((1,), (1,)), ((), ())),
        preferred_element_type=jnp.float32)                     # [L, L]
    # Doubled copy so (tau + s) % L becomes a plain dynamic sublane slice.
    a2_ref[pl.ds(0, L), :] = a
    a2_ref[pl.ds(L, L), :] = a

    eye = (lax.broadcasted_iota(jnp.int32, (L, L), 0) ==
           lax.broadcasted_iota(jnp.int32, (L, L), 1)).astype(jnp.float32)
    lane = lax.broadcasted_iota(jnp.int32, (1, L), 1)
    inv_c = jnp.float32(1.0 / q_ref.shape[2])

    def body(tau, acc):
        blk = a2_ref[pl.ds(tau, L), :]                          # A[tau:tau+L]
        val = jnp.sum(blk * eye) * inv_c                        # diagonal sum
        return acc + jnp.where(lane == tau, val, jnp.float32(0.0))

    mv_ref[0] = lax.fori_loop(0, L, body, jnp.zeros((1, L), jnp.float32))


def corr_mean(q, k):
    """q, k: [B, L, C] -> mean-over-channels circular correlation [B, L] f32."""
    B, L, C = q.shape
    out = pl.pallas_call(
        _corr_mean_kernel,
        grid_spec=pltpu.PrefetchScalarGridSpec(
            num_scalar_prefetch=0,
            grid=(B,),
            in_specs=[
                pl.BlockSpec((1, L, C), lambda b: (b, 0, 0)),
                pl.BlockSpec((1, L, C), lambda b: (b, 0, 0)),
            ],
            out_specs=pl.BlockSpec((1, 1, L), lambda b: (b, 0, 0)),
            scratch_shapes=[pltpu.VMEM((2 * L, L), jnp.float32)],
        ),
        out_shape=jax.ShapeDtypeStruct((B, 1, L), jnp.float32),
        compiler_params=pltpu.CompilerParams(
            dimension_semantics=("parallel",)),
    )(q, k)
    return out[:, 0, :]


# ---------------------------------------------------------------------------
# Fused time-delay aggregation (inference path) + output projection
#   out[b] = (sum_i w[b,i] * roll(v[b], delay[b,i], axis=L)) @ Wo + bo
# ---------------------------------------------------------------------------

def _agg_outproj_kernel(top_k, delay_ref, w_ref, v_ref, wo_ref, bo_ref,
                        o_ref, v2_ref):
    b = pl.program_id(0)
    L = v_ref.shape[1]
    v = v_ref[0]                                                # [L, HD]
    v2_ref[pl.ds(0, L), :] = v.astype(jnp.float32)
    v2_ref[pl.ds(L, L), :] = v.astype(jnp.float32)

    acc = jnp.zeros(v.shape, jnp.float32)
    for i in range(top_k):                    # top_k = int(factor*log(L)), tiny
        d = delay_ref[b, i]                   # int32 scalar from SMEM
        wgt = w_ref[b, i]                     # f32 scalar from SMEM
        # v2[d + t, c] == v[(t + d) % L, c]  -> dynamic sublane slice, no modulo
        acc = acc + wgt * v2_ref[pl.ds(d, L), :]

    out = jnp.dot(acc.astype(wo_ref.dtype), wo_ref[...],
                  preferred_element_type=jnp.float32)
    o_ref[0] = (out + bo_ref[...].astype(jnp.float32)).astype(o_ref.dtype)


def time_delay_agg_outproj(values, delay, weights, wo, bo, top_k, out_dtype):
    """values: [B, L, HD]; delay/weights: [B, top_k] -> [B, L, d_model]."""
    B, L, HD = values.shape
    d_model = wo.shape[1]
    grid_spec = pltpu.PrefetchScalarGridSpec(
        num_scalar_prefetch=2,
        grid=(B,),
        in_specs=[
            pl.BlockSpec((1, L, HD), lambda b, d_ref, w_ref: (b, 0, 0)),
            pl.BlockSpec((HD, d_model), lambda b, d_ref, w_ref: (0, 0)),
            pl.BlockSpec((1, d_model), lambda b, d_ref, w_ref: (0, 0)),
        ],
        out_specs=pl.BlockSpec((1, L, d_model),
                               lambda b, d_ref, w_ref: (b, 0, 0)),
        scratch_shapes=[pltpu.VMEM((2 * L, HD), jnp.float32)],
    )
    return pl.pallas_call(
        functools.partial(_agg_outproj_kernel, top_k),
        grid_spec=grid_spec,
        out_shape=jax.ShapeDtypeStruct((B, L, d_model), out_dtype),
        compiler_params=pltpu.CompilerParams(
            dimension_semantics=("parallel",)),
    )(delay.astype(jnp.int32), weights.astype(jnp.float32),
      values, wo.astype(values.dtype),
      bo.astype(jnp.float32).reshape(1, d_model))


# ---------------------------------------------------------------------------
# AutoCorrelationLayer forward (glue in plain JAX, hot paths in Pallas)
# ---------------------------------------------------------------------------

def init_params(key, d_model, n_heads, d_keys=None, d_values=None):
    d_keys = d_keys or d_model // n_heads
    d_values = d_values or d_model // n_heads

    def lin_init(k, fan_in, fan_out):
        k1, k2 = jax.random.split(k)
        bound = 1.0 / math.sqrt(fan_in)
        w = jax.random.uniform(k1, (fan_in, fan_out), jnp.float32, -bound, bound)
        b = jax.random.uniform(k2, (fan_out,), jnp.float32, -bound, bound)
        return w, b

    kq, kk, kv, ko = jax.random.split(key, 4)
    return {
        "query": lin_init(kq, d_model, d_keys * n_heads),
        "key": lin_init(kk, d_model, d_keys * n_heads),
        "value": lin_init(kv, d_model, d_values * n_heads),
        "out": lin_init(ko, d_values * n_heads, d_model),
    }


def autocorrelation_layer_forward(params, queries, keys, values, attn_mask=None,
                                  n_heads=4, factor=1,
                                  compute_dtype=jnp.float32):
    del attn_mask  # AutoCorrelation ignores the mask
    B, L, d_model = queries.shape
    _, S, _ = keys.shape

    Wq, bq = params["query"]
    Wk, bk = params["key"]
    Wv, bv = params["value"]
    Wo, bo = params["out"]
    dqk = Wq.shape[1]                         # H * d_keys
    dv = Wv.shape[1]                          # H * d_values
    cd = compute_dtype

    # --- Q/K/V projections: fused, tiled matmul kernels ---------------------
    if queries is keys and keys is values:
        w = jnp.concatenate([Wq, Wk, Wv], axis=1)
        bias = jnp.concatenate([bq, bk, bv], axis=0)
        qkv = linear(queries.reshape(B * L, d_model).astype(cd), w, bias)
        qkv = qkv.reshape(B, L, 2 * dqk + dv)
        q, k, v = qkv[..., :dqk], qkv[..., dqk:2 * dqk], qkv[..., 2 * dqk:]
    else:
        q = linear(queries.reshape(B * L, d_model).astype(cd), Wq, bq
                   ).reshape(B, L, dqk)
        if keys is values:
            w = jnp.concatenate([Wk, Wv], axis=1)
            bias = jnp.concatenate([bk, bv], axis=0)
            kv = linear(keys.reshape(B * S, d_model).astype(cd), w, bias
                        ).reshape(B, S, dqk + dv)
            k, v = kv[..., :dqk], kv[..., dqk:]
        else:
            k = linear(keys.reshape(B * S, d_model).astype(cd), Wk, bk
                       ).reshape(B, S, dqk)
            v = linear(values.reshape(B * S, d_model).astype(cd), Wv, bv
                       ).reshape(B, S, dv)

    # --- length alignment (AutoCorrelation.forward) --------------------------
    if L > S:
        k = jnp.concatenate([k, jnp.zeros((B, L - S, dqk), k.dtype)], axis=1)
        v = jnp.concatenate([v, jnp.zeros((B, L - S, dv), v.dtype)], axis=1)
    elif S > L:
        k = k[:, :L]
        v = v[:, :L]

    # --- period-based dependencies: only mean_{h,e}(corr) is consumed --------
    mean_value = corr_mean(q, k)                               # [B, L] f32

    # --- top-k delays + softmax weights (tiny [B, top_k], stays in JAX) ------
    # TODO(synk): lax.top_k (sort-based selection) has no clean Pallas TPU
    # equivalent; kept in plain JAX.
    top_k = max(int(factor * math.log(L)), 1)
    weights, delay = lax.top_k(mean_value, top_k)              # [B, top_k]
    tmp_corr = jax.nn.softmax(weights, axis=-1)

    # --- time-delay aggregation fused with the output projection -------------
    out = time_delay_agg_outproj(v, delay, tmp_corr, Wo, bo, top_k,
                                 out_dtype=queries.dtype)
    attn = None  # output_attention=False
    return out, attn


# ---------------------------------------------------------------------------
# Pure-JAX reference (mirrors the PyTorch module, FFT-based correlation)
# ---------------------------------------------------------------------------

def reference_forward(params, queries, keys, values, n_heads=4, factor=1):
    hp = lax.Precision.HIGHEST
    B, L, d_model = queries.shape
    _, S, _ = keys.shape
    H = n_heads
    Wq, bq = params["query"]
    Wk, bk = params["key"]
    Wv, bv = params["value"]
    Wo, bo = params["out"]

    q = (jnp.matmul(queries, Wq, precision=hp) + bq).reshape(B, L, H, -1)
    k = (jnp.matmul(keys, Wk, precision=hp) + bk).reshape(B, S, H, -1)
    v = (jnp.matmul(values, Wv, precision=hp) + bv).reshape(B, S, H, -1)
    E = q.shape[-1]
    Dv = v.shape[-1]

    if L > S:
        pad = L - S
        k = jnp.concatenate([k, jnp.zeros((B, pad, H, E), q.dtype)], axis=1)
        v = jnp.concatenate([v, jnp.zeros((B, pad, H, Dv), q.dtype)], axis=1)
    else:
        k = k[:, :L]
        v = v[:, :L]

    qp = jnp.transpose(q, (0, 2, 3, 1))
    kp = jnp.transpose(k, (0, 2, 3, 1))
    vp = jnp.transpose(v, (0, 2, 3, 1))

    qf = jnp.fft.rfft(qp, axis=-1)
    kf = jnp.fft.rfft(kp, axis=-1)
    corr = jnp.fft.irfft(qf * jnp.conj(kf), n=L, axis=-1)

    top_k = max(int(factor * math.log(L)), 1)
    mean_value = jnp.mean(corr, axis=(1, 2))
    weights, delay = lax.top_k(mean_value, top_k)
    tmp_corr = jax.nn.softmax(weights, axis=-1)

    init_index = jnp.arange(L)
    agg = jnp.zeros_like(vp)
    for i in range(top_k):
        idx = (init_index[None, :] + delay[:, i][:, None]) % L
        idx_b = jnp.broadcast_to(idx[:, None, None, :], vp.shape)
        pattern = jnp.take_along_axis(vp, idx_b, axis=-1)
        agg = agg + pattern * tmp_corr[:, i][:, None, None, None]

    out = jnp.transpose(agg, (0, 3, 1, 2)).reshape(B, L, H * Dv)
    out = jnp.matmul(out, Wo, precision=hp) + bo
    return out, None


# ---------------------------------------------------------------------------

if __name__ == "__main__":
    B, L, S, D_MODEL, N_HEADS = 2, 16, 8, 32, 4

    key = jax.random.PRNGKey(0)
    k_params, k_x, k_y = jax.random.split(key, 3)
    params = init_params(k_params, D_MODEL, N_HEADS)

    x = jax.random.normal(k_x, (B, L, D_MODEL), jnp.float32)    # queries
    y = jax.random.normal(k_y, (B, S, D_MODEL), jnp.float32)    # cross keys/vals

    # 1) self-attention (fused QKV projection path)
    out_self, attn = autocorrelation_layer_forward(
        params, x, x, x, attn_mask=None, n_heads=N_HEADS, factor=1)
    out_self = jax.block_until_ready(out_self)
    ref_self, _ = reference_forward(params, x, x, x, n_heads=N_HEADS, factor=1)
    err_self = float(jnp.max(jnp.abs(out_self - ref_self)))
    assert out_self.shape == (B, L, D_MODEL)
    assert attn is None
    assert err_self < 5e-3, f"self-attention max abs error: {err_self}"

    # 2) cross-attention (keys/values shorter than queries -> zero-pad path,
    #    fused K/V projection)
    out_cross, _ = autocorrelation_layer_forward(
        params, x, y, y, attn_mask=None, n_heads=N_HEADS, factor=1)
    out_cross = jax.block_until_ready(out_cross)
    ref_cross, _ = reference_forward(params, x, y, y, n_heads=N_HEADS, factor=1)
    err_cross = float(jnp.max(jnp.abs(out_cross - ref_cross)))
    assert out_cross.shape == (B, L, D_MODEL)
    assert err_cross < 5e-3, f"cross-attention max abs error: {err_cross}"

    # 3) bf16 mixed-precision projections (recommended on v6e/v7x); checked for
    #    shape/finiteness only since bf16 rounding can legitimately flip
    #    near-tied top-k delay selections relative to the f32 reference.
    out_bf16, _ = autocorrelation_layer_forward(
        params, x, x, x, attn_mask=None, n_heads=N_HEADS, factor=1,
        compute_dtype=jnp.bfloat16)
    out_bf16 = jax.block_until_ready(out_bf16)
    assert out_bf16.shape == (B, L, D_MODEL)
    assert bool(jnp.all(jnp.isfinite(out_bf16)))

    print("KERNEL_OK")
</pallas_src>

<mosaic_0001>
module attributes {stable_mosaic.version = 11 : i64} {
  func.func @_linear_kernel(%arg0: i32, %arg1: i32, %arg2: i32, %arg3: memref<32x32xf32, #tpu.memory_space<vmem>>, %arg4: memref<32x96xf32, #tpu.memory_space<vmem>>, %arg5: memref<1x96xf32, #tpu.memory_space<vmem>>, %arg6: memref<32x96xf32, #tpu.memory_space<vmem>>, %arg7: memref<32x96xf32, #tpu.memory_space<vmem>>) attributes {dimension_semantics = [#tpu.dimension_semantics<parallel>, #tpu.dimension_semantics<parallel>, #tpu.dimension_semantics<arbitrary>], iteration_bounds = array<i64: 1, 1, 1>, scalar_prefetch = 0 : i64, scratch_operands = 1 : i64, tpu.core_type = #tpu.core_type<tc>, window_params = [{transform_indices = @transform_0, window_bounds = array<i64: 32, 32>}, {transform_indices = @transform_1, window_bounds = array<i64: 32, 96>}, {transform_indices = @transform_2, window_bounds = array<i64: 1, 96>}, {transform_indices = @transform_3, window_bounds = array<i64: 32, 96>}]} {
    %c0_i32 = arith.constant 0 : i32
    %0 = arith.cmpi eq, %arg2, %c0_i32 : i32
    %1 = arith.extui %0 : i1 to i32
    %c0_i32_0 = arith.constant 0 : i32
    %2 = arith.cmpi ne, %1, %c0_i32_0 : i32
    scf.if %2 {
      %cst_10 = arith.constant 0.000000e+00 : f32
      %12 = vector.broadcast %cst_10 : f32 to vector<32x96xf32>
      %c0_11 = arith.constant 0 : index
      %c0_12 = arith.constant 0 : index
      %13 = vector.load %arg7[%c0_11, %c0_12] : memref<32x96xf32, #tpu.memory_space<vmem>>, vector<32x96xf32>
      tpu.vector_store %arg7[%c0_11, %c0_12], %12 {strides = array<i32>} : memref<32x96xf32, #tpu.memory_space<vmem>>, vector<32x96xf32>,
    } else {
    }
    %c0 = arith.constant 0 : index
    %c0_1 = arith.constant 0 : index
    %3 = vector.load %arg7[%c0, %c0_1] : memref<32x96xf32, #tpu.memory_space<vmem>>, vector<32x96xf32>
    %c0_2 = arith.constant 0 : index
    %c0_3 = arith.constant 0 : index
    %4 = vector.load %arg3[%c0_2, %c0_3] : memref<32x32xf32, #tpu.memory_space<vmem>>, vector<32x32xf32>
    %c0_4 = arith.constant 0 : index
    %c0_5 = arith.constant 0 : index
    %5 = vector.load %arg4[%c0_4, %c0_5] : memref<32x96xf32, #tpu.memory_space<vmem>>, vector<32x96xf32>
    %cst = arith.constant dense<0.000000e+00> : vector<32x96xf32>
    %6 = tpu.matmul %4, %5, %cst {dimension_numbers = #tpu.dot_dimension_numbers<[1], [0], [0], [1], [0, 0, 1, 1], [], []>} : vector<32x32xf32>, vector<32x96xf32>, vector<32x96xf32> -> vector<32x96xf32>
    %7 = arith.addf %3, %6 : vector<32x96xf32>
    %c0_6 = arith.constant 0 : index
    %c0_7 = arith.constant 0 : index
    %8 = vector.load %arg7[%c0_6, %c0_7] : memref<32x96xf32, #tpu.memory_space<vmem>>, vector<32x96xf32>
    tpu.vector_store %arg7[%c0_6, %c0_7], %7 {strides = array<i32>} : memref<32x96xf32, #tpu.memory_space<vmem>>, vector<32x96xf32>,
    %c0_i32_8 = arith.constant 0 : i32
    %9 = arith.cmpi eq, %arg2, %c0_i32_8 : i32
    %10 = arith.extui %9 : i1 to i32
    %c0_i32_9 = arith.constant 0 : i32
    %11 = arith.cmpi ne, %10, %c0_i32_9 : i32
    scf.if %11 {
      %c0_10 = arith.constant 0 : index
      %c0_11 = arith.constant 0 : index
      %12 = vector.load %arg7[%c0_10, %c0_11] : memref<32x96xf32, #tpu.memory_space<vmem>>, vector<32x96xf32>
      %c0_12 = arith.constant 0 : index
      %c0_13 = arith.constant 0 : index
      %13 = vector.load %arg5[%c0_12, %c0_13] : memref<1x96xf32, #tpu.memory_space<vmem>>, vector<1x96xf32>
      %14 = vector.broadcast %13 : vector<1x96xf32> to vector<32x96xf32>
      %15 = arith.addf %12, %14 : vector<32x96xf32>
      %c0_14 = arith.constant 0 : index
      %c0_15 = arith.constant 0 : index
      %16 = vector.load %arg6[%c0_14, %c0_15] : memref<32x96xf32, #tpu.memory_space<vmem>>, vector<32x96xf32>
      tpu.vector_store %arg6[%c0_14, %c0_15], %15 {strides = array<i32>} : memref<32x96xf32, #tpu.memory_space<vmem>>, vector<32x96xf32>,
    } else {
    }
    return
  }
  func.func @transform_0(%arg0: i32, %arg1: i32, %arg2: i32) -> (i32, i32) {
    %c0_i32 = arith.constant 0 : i32
    return %arg0, %arg2 : i32, i32
  }
  func.func @transform_1(%arg0: i32, %arg1: i32, %arg2: i32) -> (i32, i32) {
    %c0_i32 = arith.constant 0 : i32
    return %arg2, %arg1 : i32, i32
  }
  func.func @transform_2(%arg0: i32, %arg1: i32, %arg2: i32) -> (i32, i32) {
    %c0_i32 = arith.constant 0 : i32
    %c0_i32_0 = arith.constant 0 : i32
    return %c0_i32, %arg1 : i32, i32
  }
  func.func @transform_3(%arg0: i32, %arg1: i32, %arg2: i32) -> (i32, i32) {
    %c0_i32 = arith.constant 0 : i32
    return %arg0, %arg1 : i32, i32
  }
}

</mosaic_0001>

<llo_original>
// kernel: tpu_custom_call.1
$region0: #{tpu_custom_call.1}
  #allocation0 [shape = 'u32[]', space=smem, size = 0x4, offset = 0x4, fixed_abs, tag = 'smem constant byte address 0x4 - core index']
  #allocation1 [shape = 'u32[144,128]{1,0:T(1,128)}', space=vmem, size = 0x12000, scoped, tag = 'internal scratch']
  #allocation2 [shape = 'f32[32,96]{1,0:T(8,128)}', space=vmem, size = 0x4000, scoped, tag = 'scratch operand']
  %s0 = inlined_call_operand.hbm [shape: f32[32,32], index: 0, kind: input, shape index: {}]
  %s1 = inlined_call_operand.hbm [shape: f32[32,96], index: 1, kind: input, shape index: {}]
  %s2 = inlined_call_operand.vmem [shape: f32[1,96], index: 2, kind: input, shape index: {}]
  %s3 = inlined_call_operand.hbm [shape: f32[32,96], index: 3, kind: output, shape index: {}]
  %s4 = sld [smem:[#allocation0]]
  $region38: #{tpu_custom_call.1} parent=0
    _
  %s6 = ssub.s32 1, %s4
  %s7 = scalar_select 0, %s6, %s4
  $region1: #{tpu_custom_call.1} parent=0
    #allocation3 [shape = 'u8[16384]{0}', space=vmem, size = 0x4000, scoped, tag = 'input window, operand 0, single buffered']
    #allocation4 [shape = 's32[1]{0}', space=sflag, size = 0x4, scoped, tag = 'scoped memory for tpu_custom_call.1']
    #allocation5 [shape = 's32[1]{0}', space=sflag, size = 0x4, scoped, tag = 'scoped memory for tpu_custom_call.1']
    #allocation6 [shape = 'u8[16384]{0}', space=vmem, size = 0x4000, scoped, tag = 'input window, operand 1, single buffered']
    #allocation7 [shape = 's32[1]{0}', space=sflag, size = 0x4, scoped, tag = 'scoped memory for tpu_custom_call.1']
    #allocation8 [shape = 'u8[16384]{0}', space=vmem, size = 0x4000, scoped, tag = 'output window, operand 0, single buffered']
    %8 = vsyncpa [#allocation4], 0
    %9 = vsyncpa [#allocation7], 0
    %10 = vsyncpa [#allocation5], 0
    // Predicated region
    $region2: #{tpu_custom_call.1} parent=1 // pred_check
      _
    $region3: #{tpu_custom_call.1} parent=1 // pred_check_branch
      %12 = sbr.rel (0) target = $region5
    $region4: #{tpu_custom_call.1} parent=1 // pred_region
      %s14 = ssub.s32 512, 512
      %15 = vsyncadd [#allocation4], %s14
      %s16 = sshll.u32 [#allocation3], 4
      %s17 = int_to_ptr.vmem [resolvable:$true] %s16
      %22 = dma.hbm_to_vmem [thread:$0]  %s0, 512, %s17, [#allocation4], 128, 128, 8
    $region5: #{tpu_custom_call.1} parent=1 // pred_fallthru
      _
    // Predicated region
    $region6: #{tpu_custom_call.1} parent=1 // pred_check
      _
    $region7: #{tpu_custom_call.1} parent=1 // pred_check_branch
      %24 = sbr.rel (0) target = $region9
    $region8: #{tpu_custom_call.1} parent=1 // pred_region
      %s26 = ssub.s32 512, 512
      %27 = vsyncadd [#allocation7], %s26
      %s28 = sshll.u32 [#allocation6], 4
      %s29 = int_to_ptr.vmem [resolvable:$true] %s28
      %34 = dma.hbm_to_vmem [thread:$0]  %s1, 512, %s29, [#allocation7], 128, 128, 8
    $region9: #{tpu_custom_call.1} parent=1 // pred_fallthru
      _
    // Predicated region
    $region10: #{tpu_custom_call.1} parent=1 // pred_check
      _
    $region11: #{tpu_custom_call.1} parent=1 // pred_check_branch
      %36 = sbr.rel (0) target = $region13
    $region12: #{tpu_custom_call.1} parent=1 // pred_region
      _
    $region13: #{tpu_custom_call.1} parent=1 // pred_fallthru
      _
    // Predicated region
    $region14: #{tpu_custom_call.1} parent=1 // pred_check
      _
    $region15: #{tpu_custom_call.1} parent=1 // pred_check_branch
      %38 = sbr.rel (0) target = $region17
    $region16: #{tpu_custom_call.1} parent=1 // pred_region
      %39 = dma.done [#allocation4], 512
    $region17: #{tpu_custom_call.1} parent=1 // pred_fallthru
      _
    // Predicated region
    $region18: #{tpu_custom_call.1} parent=1 // pred_check
      _
    $region19: #{tpu_custom_call.1} parent=1 // pred_check_branch
      %41 = sbr.rel (0) target = $region21
    $region20: #{tpu_custom_call.1} parent=1 // pred_region
      %42 = dma.done [#allocation7], 512
    $region21: #{tpu_custom_call.1} parent=1 // pred_fallthru
      _
    %p43 = scmp.eq.s32.totalorder 0, 0
    // Predicated region
    $region22: #{tpu_custom_call.1} parent=1 // pred_check
      %p44 = pneg %p43
    $region23: #{tpu_custom_call.1} parent=1 // pred_check_branch
      %46 = sbr.rel (%p44) target = $region25
    $region24: #{tpu_custom_call.1} parent=1 // pred_region
      %vm47 = vcmask 785408
      %48 = vst.msk [vmem:[#allocation2] sm:$0xff] %vm47, 0.0
      %49 = vst.msk [vmem:[#allocation2 + $0x8] sm:$0xff] %vm47, 0.0
      %50 = vst.msk [vmem:[#allocation2 + $0x10] sm:$0xff] %vm47, 0.0
      %51 = vst.msk [vmem:[#allocation2 + $0x18] sm:$0xff] %vm47, 0.0
    $region25: #{tpu_custom_call.1} parent=1 // pred_fallthru
      _
    %v52 = vld [vmem:[#allocation2] sm:$0xff]
    %v53 = vld [vmem:[#allocation2 + $0x8] sm:$0xff]
    %v54 = vld [vmem:[#allocation2 + $0x10] sm:$0xff]
    %v55 = vld [vmem:[#allocation2 + $0x18] sm:$0xff]
    %v56 = vld [vmem:[#allocation3] sm:$0xff]
    %v57 = vld [vmem:[#allocation3 + $0x8] sm:$0xff]
    %v58 = vld [vmem:[#allocation3 + $0x10] sm:$0xff]
    %v59 = vld [vmem:[#allocation3 + $0x18] sm:$0xff]
    %v60 = vld [vmem:[#allocation6] sm:$0xff]
    %v61 = vld [vmem:[#allocation6 + $0x8] sm:$0xff]
    %v62 = vld [vmem:[#allocation6 + $0x10] sm:$0xff]
    %v63 = vld [vmem:[#allocation6 + $0x18] sm:$0xff]
    %vm64 = vcmask 261120
    %v66 = vsel %vm64, %v56, 0
    %v69 = vsel %vm64, %v57, 0
    %v72 = vsel %vm64, %v58, 0
    %v75 = vsel %vm64, %v59, 0
    %77 = vmatprep.subr.mxu0 0.0
    %78 = vmatpush1.msra.mxu0 %v60
    %79 = vmatprep.subr.mxu0 0.0
    %80 = vmatpush1.msra.mxu0 %v61
    %81 = vmatprep.subr.mxu0 0.0
    %82 = vmatpush1.msra.mxu0 %v62
    %83 = vmatprep.subr.mxu0 0.0
    %84 = vmatpush1.msra.mxu0 %v63
    %85 = vmatprep.subr.mxu0 0.0
    %86 = vmatpush1.msra.mxu0 0.0
    %87 = vmatprep.subr.mxu0 0.0
    %88 = vmatpush1.msra.mxu0 0.0
    %89 = vmatprep.subr.mxu0 0.0
    %90 = vmatpush1.msra.mxu0 0.0
    %91 = vmatprep.subr.mxu0 0.0
    %92 = vmatpush1.msra.mxu0 0.0
    %93 = vmatprep.subr.mxu0 0.0
    %94 = vmatpush1.msra.mxu0 0.0
    %95 = vmatprep.subr.mxu0 0.0
    %96 = vmatpush1.msra.mxu0 0.0
    %97 = vmatprep.subr.mxu0 0.0
    %98 = vmatpush1.msra.mxu0 0.0
    %99 = vmatprep.subr.mxu0 0.0
    %100 = vmatpush1.msra.mxu0 0.0
    %101 = vmatprep.subr.mxu0 0.0
    %102 = vmatpush1.msra.mxu0 0.0
    %103 = vmatprep.subr.mxu0 0.0
    %104 = vmatpush1.msra.mxu0 0.0
    %105 = vmatprep.subr.mxu0 0.0
    %106 = vmatpush1.msra.mxu0 0.0
    %107 = vmatprep.subr.mxu0 0.0
    %108 = vmatpush1.msra.mxu0 0.0
    %109 = vmatprep.subr.mxu0 0.0
    %110 = vmatpush1.msra.mxu0 0.0
    %111 = vmatprep.subr.mxu0 0.0
    %112 = vmatpush1.msra.mxu0 0.0
    %113 = vmatprep.subr.mxu0 0.0
    %114 = vmatpush1.msra.mxu0 0.0
    %115 = vmatprep.subr.mxu0 0.0
    %116 = vmatpush1.msra.mxu0 0.0
    %117 = vmatprep.subr.mxu0 0.0
    %118 = vmatpush1.msra.mxu0 0.0
    %119 = vmatprep.subr.mxu0 0.0
    %120 = vmatpush1.msra.mxu0 0.0
    %121 = vmatprep.subr.mxu0 0.0
    %122 = vmatpush1.msra.mxu0 0.0
    %123 = vmatprep.subr.mxu0 0.0
    %124 = vmatpush1.msra.mxu0 0.0
    %125 = vmatprep.subr.mxu0 0.0
    %126 = vmatpush1.msra.mxu0 0.0
    %127 = vmatprep.subr.mxu0 0.0
    %128 = vmatpush1.msra.mxu0 0.0
    %129 = vmatprep.subr.mxu0 0.0
    %130 = vmatpush1.msra.mxu0 0.0
    %131 = vmatprep.subr.mxu0 0.0
    %132 = vmatpush1.msra.mxu0 0.0
    %133 = vmatprep.subr.mxu0 0.0
    %134 = vmatpush1.msra.mxu0 0.0
    %135 = vmatprep.subr.mxu0 0.0
    %136 = vmatpush1.msra.mxu0 0.0
    %137 = vmatprep.subr.mxu0 0.0
    %138 = vmatpush1.msra.mxu0 0.0
    %139 = vmatprep.subr.mxu0 0.0
    %140 = vmatpush1.msra.mxu0 0.0
    %141 = vmatprep.mubr.f32.mxu0 0.0
    %142 = vmatmul.mubr.f32.gmra.mrb[0].mxu0 %v66
    %v143 = vpop.f32.mrb[0].mxu0
    %v144 = vadd.f32 0.0, %v143
    %v145 = vpop.f32.mrb[0].mxu0
    %146 = vmatprep.mubr.f32.mxu0 0.0
    %147 = vmatmul.mubr.f32.gmra.mrb[0].mxu0 %v69
    %v148 = vpop.f32.mrb[0].mxu0
    %v149 = vadd.f32 0.0, %v148
    %v150 = vpop.f32.mrb[0].mxu0
    %151 = vmatprep.mubr.f32.mxu0 0.0
    %152 = vmatmul.mubr.f32.gmra.mrb[0].mxu0 %v72
    %v153 = vpop.f32.mrb[0].mxu0
    %v154 = vadd.f32 0.0, %v153
    %v155 = vpop.f32.mrb[0].mxu0
    %156 = vmatprep.mubr.f32.mxu0 0.0
    %157 = vmatmul.mubr.f32.gmra.mrb[0].mxu0 %v75
    %v158 = vpop.f32.mrb[0].mxu0
    %v159 = vadd.f32 0.0, %v158
    %v160 = vpop.f32.mrb[0].mxu0
    %161 = vdwg.mxu0
    %v162 = vadd.f32 %v52, %v144
    %v163 = vadd.f32 %v53, %v149
    %v164 = vadd.f32 %v54, %v154
    %v165 = vadd.f32 %v55, %v159
    %vm166 = vcmask 785408
    %167 = vst.msk [vmem:[#allocation2] sm:$0xff] %vm166, %v162
    %168 = vst.msk [vmem:[#allocation2 + $0x8] sm:$0xff] %vm166, %v163
    %169 = vst.msk [vmem:[#allocation2 + $0x10] sm:$0xff] %vm166, %v164
    %170 = vst.msk [vmem:[#allocation2 + $0x18] sm:$0xff] %vm166, %v165
    // Predicated region
    $region26: #{tpu_custom_call.1} parent=1 // pred_check
      %p171 = pneg %p43
    $region27: #{tpu_custom_call.1} parent=1 // pred_check_branch
      %173 = sbr.rel (%p171) target = $region29
    $region28: #{tpu_custom_call.1} parent=1 // pred_region
      %v174 = vld [vmem:[#allocation2] sm:$0xff]
      %v175 = vld [vmem:[#allocation2 + $0x8] sm:$0xff]
      %v176 = vld [vmem:[#allocation2 + $0x10] sm:$0xff]
      %v177 = vld [vmem:[#allocation2 + $0x18] sm:$0xff]
      %v178 = vld [vmem:[%s2] sm:$0x1]
      %v180 = vlaneseq
      %v181 = vshrl.u32 %v180, 7
      %v182 = vsub.s32 0, %v181
      %v183 = vrot.slane %v178, %v182
      %v185 = vadd.f32 %v174, %v183
      %v186 = vadd.f32 %v175, %v183
      %v187 = vadd.f32 %v176, %v183
      %v188 = vadd.f32 %v177, %v183
      %189 = vst.msk [vmem:[#allocation8] sm:$0xff] %vm166, %v185
      %190 = vst.msk [vmem:[#allocation8 + $0x8] sm:$0xff] %vm166, %v186
      %191 = vst.msk [vmem:[#allocation8 + $0x10] sm:$0xff] %vm166, %v187
      %192 = vst.msk [vmem:[#allocation8 + $0x18] sm:$0xff] %vm166, %v188
    $region29: #{tpu_custom_call.1} parent=1 // pred_fallthru
      _
    // Predicated region
    $region30: #{tpu_custom_call.1} parent=1 // pred_check
      _
    $region31: #{tpu_custom_call.1} parent=1 // pred_check_branch
      %194 = sbr.rel (0) target = $region33
    $region32: #{tpu_custom_call.1} parent=1 // pred_region
      %s196 = ssub.s32 512, 512
      %197 = vsyncadd [#allocation5], %s196
      %s198 = sshll.u32 [#allocation8], 4
      %s199 = int_to_ptr.vmem [resolvable:$true] %s198
      %204 = dma.vmem_to_hbm [thread:$0]  %s199, 512, %s3, [#allocation5], 128, 128, 8
    $region33: #{tpu_custom_call.1} parent=1 // pred_fallthru
      _
    // Predicated region
    $region34: #{tpu_custom_call.1} parent=1 // pred_check
      _
    $region35: #{tpu_custom_call.1} parent=1 // pred_check_branch
      %206 = sbr.rel (0) target = $region37
    $region36: #{tpu_custom_call.1} parent=1 // pred_region
      %207 = dma.done [#allocation5], 512
    $region37: #{tpu_custom_call.1} parent=1 // pred_fallthru
      _
    %208 = vsyncpa [#allocation4], 1
    %209 = vsyncpa [#allocation7], 1
    %210 = vsyncpa [#allocation5], 1

</llo_original>
